<compile_context>
chip_gen: v6e
topology: v6e:2x2x1
jax: 0.10.0
libtpu: 0.0.40
codegen_flags: <defaults>
</compile_context>

<pallas_src>
import jax
import jax.numpy as jnp
from jax import lax
from jax.experimental import pallas as pl
from jax.experimental.pallas import tpu as pltpu


def _stein_cv_kernel(idx_ref, b_ref, score_ref, a_ref, out_ref):
    """One batch tile of y = score_matrix[idx] @ a + b, fully vectorized.

    idx_ref   : VMEM (1, TB) int32   row indices for this batch tile
    b_ref     : SMEM (1,)    f32     bias
    score_ref : VMEM (N, D)  f32     full score matrix (grid-resident)
    a_ref     : VMEM (1, D)  f32     coefficient vector (lane-dense)
    out_ref   : VMEM (1, TB) f32     lane-dense output row for this tile
    """
    n_rows = score_ref.shape[0]
    tile_b = out_ref.shape[1]

    # Contract D first: proj[n] = <a, score_matrix[n]>  ->  (1, N) on the MXU.
    proj = lax.dot_general(
        a_ref[...], score_ref[...],
        dimension_numbers=(((1,), (1,)), ((), ())),
        preferred_element_type=jnp.float32,
    )

    # Row gather expressed as a one-hot matmul: build onehot (N, TB) on the
    # VPU, then (1, N) @ (N, TB) -> (1, TB) on the MXU (lane-dense result row).
    row_iota = lax.broadcasted_iota(jnp.int32, (n_rows, tile_b), 0)
    onehot = (row_iota == idx_ref[...]).astype(jnp.float32)

    # sec == 0.0 in poly_function, so only the bias is added.
    out_ref[...] = (
        jnp.dot(proj, onehot, preferred_element_type=jnp.float32) + b_ref[0]
    )


def stein_cv_forward(score_matrix, indices, a, b, *, tile_b=None):
    """Batched forward pass (equivalent to PyTorch `minibatch`).

    score_matrix : (N, D) float32
    indices      : (B,)  int32 row indices into score_matrix
    a            : (D,)  float32 parameter
    b            : ()    float32 parameter
    returns      : (B,)  float32 predictions
    """
    score_matrix = jnp.asarray(score_matrix, jnp.float32)
    indices = jnp.asarray(indices, jnp.int32)
    N, D = score_matrix.shape
    B = int(indices.shape[0])

    # Batch tile: one tile for small batches, otherwise 512 rows (multiple of
    # 128 -> unmasked lane-dense stores; amortizes the ~0.35us/step overhead).
    if tile_b is None:
        tile_b = B if B <= 512 else 512
    num_tiles = pl.cdiv(B, tile_b)
    B_pad = num_tiles * tile_b
    if B_pad != B:
        # Pad ragged batches with index 0 (a valid row); padded outputs are
        # sliced off on return.
        indices = jnp.pad(indices, (0, B_pad - B))
    idx2d = indices.reshape(1, B_pad)

    # VMEM budget: resident score matrix + one-hot temporary + small vectors.
    # Kept well inside v5e's 16 MiB default scoped VMEM (and far under v7x's
    # 64 MiB physical VMEM).
    resident_bytes = (N * D + N * tile_b + 2 * tile_b + 2 * D + N) * 4
    assert resident_bytes <= 12 * 1024 * 1024, (
        "score_matrix too large for the VMEM-resident path")
    # TODO(synk): for score matrices that do not fit VMEM, switch to a manual
    # pltpu.make_async_copy double-buffered streaming of score-matrix tiles
    # from HBM (memory_space=pl.ANY) with a per-tile partial one-hot matmul.

    a2d = jnp.asarray(a, jnp.float32).reshape(1, D)
    b1d = jnp.asarray(b, jnp.float32).reshape(1)

    out = pl.pallas_call(
        _stein_cv_kernel,
        out_shape=jax.ShapeDtypeStruct((1, B_pad), jnp.float32),
        grid_spec=pltpu.PrefetchScalarGridSpec(
            num_scalar_prefetch=0,
            grid=(num_tiles,),
            in_specs=[
                pl.BlockSpec((1, tile_b), lambda i: (0, i)),          # indices tile
                pl.BlockSpec(memory_space=pltpu.MemorySpace.SMEM),    # bias (scalar)
                pl.BlockSpec((N, D), lambda i: (0, 0)),               # score_matrix (resident)
                pl.BlockSpec((1, D), lambda i: (0, 0)),               # a (resident)
            ],
            out_specs=pl.BlockSpec((1, tile_b), lambda i: (0, i)),
        ),
        compiler_params=pltpu.CompilerParams(
            dimension_semantics=("parallel",),   # shard batch tiles across TCs on v7x
        ),
    )(idx2d, b1d, score_matrix, a2d)
    return out[0, :B]                            # (B,)


def stein_cv_forward_ref(score_matrix, indices, a, b):
    """Pure-JAX reference with identical semantics."""
    scores = jnp.take(score_matrix, indices, axis=0)             # (B, D)
    return scores @ a + b                                        # (B,)


if __name__ == "__main__":
    key = jax.random.PRNGKey(0)
    k_score, k_a, k_b, k_idx = jax.random.split(key, 4)

    N, D_in, B = 64, 128, 8   # score-matrix rows, input dim, batch size

    score_matrix = jax.random.normal(k_score, (N, D_in), dtype=jnp.float32)
    # Module __init__ uses zeros for a and b; use deterministic random values
    # here so the check is non-trivial.
    a = 0.1 * jax.random.normal(k_a, (D_in,), dtype=jnp.float32)
    b = 0.1 * jax.random.normal(k_b, (), dtype=jnp.float32)
    indices = jax.random.randint(k_idx, (B,), 0, N, dtype=jnp.int32)

    y_pred = jax.block_until_ready(stein_cv_forward(score_matrix, indices, a, b))
    y_ref = stein_cv_forward_ref(score_matrix, indices, a, b)

    assert y_pred.shape == (B,)
    assert jnp.allclose(y_pred, y_ref, atol=1e-5, rtol=1e-5), (y_pred, y_ref)
    print("KERNEL_OK")
</pallas_src>

<mosaic_0001>
module attributes {stable_mosaic.version = 11 : i64} {
  func.func @_stein_cv_kernel(%arg0: i32, %arg1: memref<1x8xi32, #tpu.memory_space<vmem>>, %arg2: memref<1xf32, #tpu.memory_space<smem>>, %arg3: memref<64x128xf32, #tpu.memory_space<vmem>>, %arg4: memref<1x128xf32, #tpu.memory_space<vmem>>, %arg5: memref<1x8xf32, #tpu.memory_space<vmem>>) attributes {dimension_semantics = [#tpu.dimension_semantics<parallel>], iteration_bounds = array<i64: 1>, scalar_prefetch = 0 : i64, scratch_operands = 0 : i64, tpu.core_type = #tpu.core_type<tc>, window_params = [{transform_indices = @transform_0, window_bounds = array<i64: 1, 8>}, {transform_indices = @transform_1, window_bounds = array<i64: 1>}, {pipeline_mode = #tpu.pipeline_mode<synchronous>, transform_indices = @transform_2, window_bounds = array<i64: 64, 128>}, {pipeline_mode = #tpu.pipeline_mode<synchronous>, transform_indices = @transform_3, window_bounds = array<i64: 1, 128>}, {transform_indices = @transform_4, window_bounds = array<i64: 1, 8>}]} {
    %c0 = arith.constant 0 : index
    %c0_0 = arith.constant 0 : index
    %0 = vector.load %arg4[%c0, %c0_0] : memref<1x128xf32, #tpu.memory_space<vmem>>, vector<1x128xf32>
    %c0_1 = arith.constant 0 : index
    %c0_2 = arith.constant 0 : index
    %1 = vector.load %arg3[%c0_1, %c0_2] : memref<64x128xf32, #tpu.memory_space<vmem>>, vector<64x128xf32>
    %cst = arith.constant dense<0.000000e+00> : vector<1x64xf32>
    %2 = tpu.matmul %0, %1, %cst {dimension_numbers = #tpu.dot_dimension_numbers<[1], [1], [0], [0], [0, 0, 1, 0], [], []>} : vector<1x128xf32>, vector<64x128xf32>, vector<1x64xf32> -> vector<1x64xf32>
    %3 = tpu.iota {dimensions = array<i32: 0>} : vector<64x8xi32>
    %c0_3 = arith.constant 0 : index
    %c0_4 = arith.constant 0 : index
    %4 = vector.load %arg1[%c0_3, %c0_4] : memref<1x8xi32, #tpu.memory_space<vmem>>, vector<1x8xi32>
    %5 = vector.broadcast %4 : vector<1x8xi32> to vector<64x8xi32>
    %6 = arith.cmpi eq, %3, %5 : vector<64x8xi32>
    %7 = arith.extui %6 : vector<64x8xi1> to vector<64x8xi32>
    %8 = arith.sitofp %7 : vector<64x8xi32> to vector<64x8xf32>
    %cst_5 = arith.constant dense<0.000000e+00> : vector<1x8xf32>
    %9 = tpu.matmul %2, %8, %cst_5 {dimension_numbers = #tpu.dot_dimension_numbers<[1], [0], [0], [1], [0, 0, 1, 1], [], []>} : vector<1x64xf32>, vector<64x8xf32>, vector<1x8xf32> -> vector<1x8xf32>
    %c0_6 = arith.constant 0 : index
    %10 = memref.load %arg2[%c0_6] : memref<1xf32, #tpu.memory_space<smem>>
    %11 = vector.broadcast %10 : f32 to vector<1x8xf32>
    %12 = arith.addf %9, %11 : vector<1x8xf32>
    %c0_7 = arith.constant 0 : index
    %c0_8 = arith.constant 0 : index
    %13 = vector.load %arg5[%c0_7, %c0_8] : memref<1x8xf32, #tpu.memory_space<vmem>>, vector<1x8xf32>
    tpu.vector_store %arg5[%c0_7, %c0_8], %12 {strides = array<i32>} : memref<1x8xf32, #tpu.memory_space<vmem>>, vector<1x8xf32>,
    return
  }
  func.func @transform_0(%arg0: i32) -> (i32, i32) {
    %c0_i32 = arith.constant 0 : i32
    %c0_i32_0 = arith.constant 0 : i32
    return %c0_i32, %arg0 : i32, i32
  }
  func.func @transform_1(%arg0: i32) -> i32 {
    %c0_i32 = arith.constant 0 : i32
    %c0_i32_0 = arith.constant 0 : i32
    return %c0_i32 : i32
  }
  func.func @transform_2(%arg0: i32) -> (i32, i32) {
    %c0_i32 = arith.constant 0 : i32
    %c0_i32_0 = arith.constant 0 : i32
    %c0_i32_1 = arith.constant 0 : i32
    return %c0_i32, %c0_i32_0 : i32, i32
  }
  func.func @transform_3(%arg0: i32) -> (i32, i32) {
    %c0_i32 = arith.constant 0 : i32
    %c0_i32_0 = arith.constant 0 : i32
    %c0_i32_1 = arith.constant 0 : i32
    return %c0_i32, %c0_i32_0 : i32, i32
  }
  func.func @transform_4(%arg0: i32) -> (i32, i32) {
    %c0_i32 = arith.constant 0 : i32
    %c0_i32_0 = arith.constant 0 : i32
    return %c0_i32, %arg0 : i32, i32
  }
}

</mosaic_0001>

<llo_original>
// kernel: tpu_custom_call.1
$region0: #{tpu_custom_call.1}
  #allocation0 [shape = 'u32[]', space=smem, size = 0x4, offset = 0x4, fixed_abs, tag = 'smem constant byte address 0x4 - core index']
  #allocation1 [shape = 'u32[144,128]{1,0:T(1,128)}', space=vmem, size = 0x12000, scoped, tag = 'internal scratch']
  #allocation2 [shape = 'f32[1]{0:T(128)S(6)}', space=smem, size = 0x200, scoped, tag = 'scoped memory for tpu_custom_call.1']
  %s0 = inlined_call_operand.vmem [shape: s32[1,8], index: 0, kind: input, shape index: {}]
  %s1 = inlined_call_operand.<no memory space> [shape: f32[1], index: 1, kind: input, shape index: {}]
  %s2 = inlined_call_operand.hbm [shape: f32[64,128], index: 2, kind: input, shape index: {}]
  %s3 = inlined_call_operand.vmem [shape: f32[1,128], index: 3, kind: input, shape index: {}]
  %s4 = inlined_call_operand.hbm [shape: f32[1,8], index: 4, kind: output, shape index: {}]
  %s5 = sld [smem:[#allocation0]]
  $region30: #{tpu_custom_call.1} parent=0
    _
  %s7 = ssub.s32 1, %s5
  %s8 = scalar_select 0, %s7, %s5
  %9 = sst [smem:[#allocation2]] %s1
  $region1: #{tpu_custom_call.1} parent=0
    #allocation3 [shape = 'u8[32768]{0}', space=vmem, size = 0x8000, scoped, tag = 'input window, operand 2, single buffered']
    #allocation4 [shape = 's32[1]{0}', space=sflag, size = 0x4, scoped, tag = 'scoped memory for tpu_custom_call.1']
    #allocation5 [shape = 's32[1]{0}', space=sflag, size = 0x4, scoped, tag = 'scoped memory for tpu_custom_call.1']
    #allocation6 [shape = 'u8[512]{0}', space=vmem, size = 0x400, scoped, tag = 'output window, operand 0, single buffered']
    %10 = vsyncpa [#allocation4], 0
    %11 = vsyncpa [#allocation5], 0
    // Predicated region
    $region2: #{tpu_custom_call.1} parent=1 // pred_check
      _
    $region3: #{tpu_custom_call.1} parent=1 // pred_check_branch
      %13 = sbr.rel (0) target = $region5
    $region4: #{tpu_custom_call.1} parent=1 // pred_region
      _
    $region5: #{tpu_custom_call.1} parent=1 // pred_fallthru
      _
    // Predicated region
    $region6: #{tpu_custom_call.1} parent=1 // pred_check
      _
    $region7: #{tpu_custom_call.1} parent=1 // pred_check_branch
      %15 = sbr.rel (0) target = $region9
    $region8: #{tpu_custom_call.1} parent=1 // pred_region
      _
    $region9: #{tpu_custom_call.1} parent=1 // pred_fallthru
      _
    // Predicated region
    $region10: #{tpu_custom_call.1} parent=1 // pred_check
      _
    $region11: #{tpu_custom_call.1} parent=1 // pred_check_branch
      %17 = sbr.rel (0) target = $region13
    $region12: #{tpu_custom_call.1} parent=1 // pred_region
      %s19 = ssub.s32 1024, 1024
      %20 = vsyncadd [#allocation4], %s19
      %s21 = sshll.u32 [#allocation3], 4
      %s22 = int_to_ptr.vmem [resolvable:$true] %s21
      %27 = dma.hbm_to_vmem [thread:$0]  %s2, 1024, %s22, [#allocation4], 128, 128, 8
    $region13: #{tpu_custom_call.1} parent=1 // pred_fallthru
      _
    // Predicated region
    $region14: #{tpu_custom_call.1} parent=1 // pred_check
      _
    $region15: #{tpu_custom_call.1} parent=1 // pred_check_branch
      %29 = sbr.rel (0) target = $region17
    $region16: #{tpu_custom_call.1} parent=1 // pred_region
      _
    $region17: #{tpu_custom_call.1} parent=1 // pred_fallthru
      _
    // Predicated region
    $region18: #{tpu_custom_call.1} parent=1 // pred_check
      _
    $region19: #{tpu_custom_call.1} parent=1 // pred_check_branch
      %31 = sbr.rel (0) target = $region21
    $region20: #{tpu_custom_call.1} parent=1 // pred_region
      %32 = dma.done [#allocation4], 1024
    $region21: #{tpu_custom_call.1} parent=1 // pred_fallthru
      _
    %v33 = vld [vmem:[%s3] sm:$0x1]
    %v34 = vld [vmem:[#allocation3] sm:$0xff]
    %v35 = vld [vmem:[#allocation3 + $0x8] sm:$0xff]
    %v36 = vld [vmem:[#allocation3 + $0x10] sm:$0xff]
    %v37 = vld [vmem:[#allocation3 + $0x18] sm:$0xff]
    %v38 = vld [vmem:[#allocation3 + $0x20] sm:$0xff]
    %v39 = vld [vmem:[#allocation3 + $0x28] sm:$0xff]
    %v40 = vld [vmem:[#allocation3 + $0x30] sm:$0xff]
    %v41 = vld [vmem:[#allocation3 + $0x38] sm:$0xff]
    %42 = vmatprep.subr.mxu0 0.0
    %43 = vmatpush1.xpose.msra.mxu0 0.0
    %44 = vmatprep.subr.mxu0 0.0
    %45 = vmatpush1.xpose.msra.mxu0 0.0
    %46 = vmatprep.subr.mxu0 0.0
    %47 = vmatpush1.xpose.msra.mxu0 0.0
    %48 = vmatprep.subr.mxu0 0.0
    %49 = vmatpush1.xpose.msra.mxu0 0.0
    %50 = vmatprep.subr.mxu0 0.0
    %51 = vmatpush1.xpose.msra.mxu0 0.0
    %52 = vmatprep.subr.mxu0 0.0
    %53 = vmatpush1.xpose.msra.mxu0 0.0
    %54 = vmatprep.subr.mxu0 0.0
    %55 = vmatpush1.xpose.msra.mxu0 0.0
    %56 = vmatprep.subr.mxu0 0.0
    %57 = vmatpush1.xpose.msra.mxu0 0.0
    %58 = vmatprep.subr.mxu0 0.0
    %59 = vmatpush1.xpose.msra.mxu0 %v41
    %60 = vmatprep.subr.mxu0 0.0
    %61 = vmatpush1.xpose.msra.mxu0 %v40
    %62 = vmatprep.subr.mxu0 0.0
    %63 = vmatpush1.xpose.msra.mxu0 %v39
    %64 = vmatprep.subr.mxu0 0.0
    %65 = vmatpush1.xpose.msra.mxu0 %v38
    %66 = vmatprep.subr.mxu0 0.0
    %67 = vmatpush1.xpose.msra.mxu0 %v37
    %68 = vmatprep.subr.mxu0 0.0
    %69 = vmatpush1.xpose.msra.mxu0 %v36
    %70 = vmatprep.subr.mxu0 0.0
    %71 = vmatpush1.xpose.msra.mxu0 %v35
    %72 = vmatprep.subr.mxu0 0.0
    %73 = vmatpush1.xpose.msra.mxu0 %v34
    %74 = vmatprep.subr.mxu0 0.0
    %75 = vmatpush2.xpose.msra.mxu0 0.0
    %76 = vmatprep.subr.mxu0 0.0
    %77 = vmatpush2.xpose.msra.mxu0 0.0
    %78 = vmatprep.subr.mxu0 0.0
    %79 = vmatpush2.xpose.msra.mxu0 0.0
    %80 = vmatprep.subr.mxu0 0.0
    %81 = vmatpush2.xpose.msra.mxu0 0.0
    %82 = vmatprep.subr.mxu0 0.0
    %83 = vmatpush2.xpose.msra.mxu0 0.0
    %84 = vmatprep.subr.mxu0 0.0
    %85 = vmatpush2.xpose.msra.mxu0 0.0
    %86 = vmatprep.subr.mxu0 0.0
    %87 = vmatpush2.xpose.msra.mxu0 0.0
    %88 = vmatprep.subr.mxu0 0.0
    %89 = vmatpush2.xpose.msra.mxu0 0.0
    %90 = vmatprep.subr.mxu0 0.0
    %91 = vmatpush2.xpose.msra.mxu0 0.0
    %92 = vmatprep.subr.mxu0 0.0
    %93 = vmatpush2.xpose.msra.mxu0 0.0
    %94 = vmatprep.subr.mxu0 0.0
    %95 = vmatpush2.xpose.msra.mxu0 0.0
    %96 = vmatprep.subr.mxu0 0.0
    %97 = vmatpush2.xpose.msra.mxu0 0.0
    %98 = vmatprep.subr.mxu0 0.0
    %99 = vmatpush2.xpose.msra.mxu0 0.0
    %100 = vmatprep.subr.mxu0 0.0
    %101 = vmatpush2.xpose.msra.mxu0 0.0
    %102 = vmatprep.subr.mxu0 0.0
    %103 = vmatpush2.xpose.msra.mxu0 0.0
    %104 = vmatprep.subr.mxu0 0.0
    %105 = vmatpush2.xpose.msra.mxu0 0.0
    %106 = vmatprep.mubr.f32.mxu0 0.0
    %107 = vmatmul.mubr.f32.gmra.mxu0 %v33
    %v108 = vpop.f32.mrf.mxu0
    %v109 = vadd.f32 0.0, %v108
    %v110 = vpop.f32.mrf.mxu0
    %111 = vdwg.mxu0
    %v112 = vlaneseq
    %v113 = vshrl.u32 %v112, 7
    %v114 = vadd.s32 %v113, 8
    %v115 = vadd.s32 %v113, 16
    %v116 = vadd.s32 %v113, 24
    %v117 = vadd.s32 %v113, 32
    %v118 = vadd.s32 %v113, 40
    %v119 = vadd.s32 %v113, 48
    %v120 = vadd.s32 %v113, 56
    %v121 = vld [vmem:[%s0] sm:$0x1]
    %v122 = vlaneseq
    %v123 = vshrl.u32 %v122, 7
    %v124 = vsub.s32 0, %v123
    %v125 = vrot.slane %v121, %v124
    %vm126 = vcmp.eq.s32.totalorder %v113, %v125
    %vm127 = vcmp.eq.s32.totalorder %v114, %v125
    %vm128 = vcmp.eq.s32.totalorder %v115, %v125
    %vm129 = vcmp.eq.s32.totalorder %v116, %v125
    %vm130 = vcmp.eq.s32.totalorder %v117, %v125
    %vm131 = vcmp.eq.s32.totalorder %v118, %v125
    %vm132 = vcmp.eq.s32.totalorder %v119, %v125
    %vm133 = vcmp.eq.s32.totalorder %v120, %v125
    %v134 = vsel %vm126, 1, 0
    %v135 = vsel %vm127, 1, 0
    %v136 = vsel %vm128, 1, 0
    %v137 = vsel %vm129, 1, 0
    %v138 = vsel %vm130, 1, 0
    %v139 = vsel %vm131, 1, 0
    %v140 = vsel %vm132, 1, 0
    %v141 = vsel %vm133, 1, 0
    %v142 = vcvt.s32.f32 %v134
    %v143 = vcvt.s32.f32 %v135
    %v144 = vcvt.s32.f32 %v136
    %v145 = vcvt.s32.f32 %v137
    %v146 = vcvt.s32.f32 %v138
    %v147 = vcvt.s32.f32 %v139
    %v148 = vcvt.s32.f32 %v140
    %v149 = vcvt.s32.f32 %v141
    %s150 = sld [smem:[#allocation2]]
    %v151 = vstv %s150
    %vm152 = vcmask 523264
    %v154 = vsel %vm152, %v109, 0
    %156 = vmatprep.subr.mxu0 0.0
    %157 = vmatpush1.msra.mxu0 0.0
    %158 = vmatprep.subr.mxu0 0.0
    %159 = vmatpush1.msra.mxu0 0.0
    %160 = vmatprep.subr.mxu0 0.0
    %161 = vmatpush1.msra.mxu0 0.0
    %162 = vmatprep.subr.mxu0 0.0
    %163 = vmatpush1.msra.mxu0 0.0
    %164 = vmatprep.subr.mxu0 0.0
    %165 = vmatpush1.msra.mxu0 0.0
    %166 = vmatprep.subr.mxu0 0.0
    %167 = vmatpush1.msra.mxu0 0.0
    %168 = vmatprep.subr.mxu0 0.0
    %169 = vmatpush1.msra.mxu0 0.0
    %170 = vmatprep.subr.mxu0 0.0
    %171 = vmatpush1.msra.mxu0 0.0
    %172 = vmatprep.subr.mxu0 0.0
    %173 = vmatpush1.msra.mxu0 %v149
    %174 = vmatprep.subr.mxu0 0.0
    %175 = vmatpush1.msra.mxu0 %v148
    %176 = vmatprep.subr.mxu0 0.0
    %177 = vmatpush1.msra.mxu0 %v147
    %178 = vmatprep.subr.mxu0 0.0
    %179 = vmatpush1.msra.mxu0 %v146
    %180 = vmatprep.subr.mxu0 0.0
    %181 = vmatpush1.msra.mxu0 %v145
    %182 = vmatprep.subr.mxu0 0.0
    %183 = vmatpush1.msra.mxu0 %v144
    %184 = vmatprep.subr.mxu0 0.0
    %185 = vmatpush1.msra.mxu0 %v143
    %186 = vmatprep.subr.mxu0 0.0
    %187 = vmatpush1.msra.mxu0 %v142
    %188 = vmatprep.subr.mxu0 0.0
    %189 = vmatpush2.msra.mxu0 0.0
    %190 = vmatprep.subr.mxu0 0.0
    %191 = vmatpush2.msra.mxu0 0.0
    %192 = vmatprep.subr.mxu0 0.0
    %193 = vmatpush2.msra.mxu0 0.0
    %194 = vmatprep.subr.mxu0 0.0
    %195 = vmatpush2.msra.mxu0 0.0
    %196 = vmatprep.subr.mxu0 0.0
    %197 = vmatpush2.msra.mxu0 0.0
    %198 = vmatprep.subr.mxu0 0.0
    %199 = vmatpush2.msra.mxu0 0.0
    %200 = vmatprep.subr.mxu0 0.0
    %201 = vmatpush2.msra.mxu0 0.0
    %202 = vmatprep.subr.mxu0 0.0
    %203 = vmatpush2.msra.mxu0 0.0
    %204 = vmatprep.subr.mxu0 0.0
    %205 = vmatpush2.msra.mxu0 0.0
    %206 = vmatprep.subr.mxu0 0.0
    %207 = vmatpush2.msra.mxu0 0.0
    %208 = vmatprep.subr.mxu0 0.0
    %209 = vmatpush2.msra.mxu0 0.0
    %210 = vmatprep.subr.mxu0 0.0
    %211 = vmatpush2.msra.mxu0 0.0
    %212 = vmatprep.subr.mxu0 0.0
    %213 = vmatpush2.msra.mxu0 0.0
    %214 = vmatprep.subr.mxu0 0.0
    %215 = vmatpush2.msra.mxu0 0.0
    %216 = vmatprep.subr.mxu0 0.0
    %217 = vmatpush2.msra.mxu0 0.0
    %218 = vmatprep.subr.mxu0 0.0
    %219 = vmatpush2.msra.mxu0 0.0
    %220 = vmatprep.mubr.f32.mxu0 0.0
    %221 = vmatmul.mubr.f32.gmra.mxu0 %v154
    %v222 = vpop.f32.mrf.mxu0
    %v223 = vadd.f32 %v151, %v222
    %v224 = vpop.f32.mrf.mxu0
    %225 = vdwg.mxu0
    %vm226 = vcmask 57344
    %227 = vst.msk [vmem:[#allocation6] sm:$0x1] %vm226, %v223
    // Predicated region
    $region22: #{tpu_custom_call.1} parent=1 // pred_check
      _
    $region23: #{tpu_custom_call.1} parent=1 // pred_check_branch
      %229 = sbr.rel (0) target = $region25
    $region24: #{tpu_custom_call.1} parent=1 // pred_region
      %s231 = ssub.s32 16, 16
      %232 = vsyncadd [#allocation5], %s231
      %s234 = sshll.u32 [#allocation6], 4
      %s235 = int_to_ptr.vmem [resolvable:$true] %s234
      %237 = dma.vmem_to_hbm [thread:$0]  %s235, 16, %s4, [#allocation5]
    $region25: #{tpu_custom_call.1} parent=1 // pred_fallthru
      _
    // Predicated region
    $region26: #{tpu_custom_call.1} parent=1 // pred_check
      _
    $region27: #{tpu_custom_call.1} parent=1 // pred_check_branch
      %239 = sbr.rel (0) target = $region29
    $region28: #{tpu_custom_call.1} parent=1 // pred_region
      %240 = dma.done [#allocation5], 16
    $region29: #{tpu_custom_call.1} parent=1 // pred_fallthru
      _
    %241 = vsyncpa [#allocation4], 1
    %242 = vsyncpa [#allocation5], 1

</llo_original>
